<compile_context>
chip_gen: v7x
topology: tpu7x:2x2x1
jax: 0.10.0
libtpu: 0.0.40
codegen_flags: <defaults>
</compile_context>

<pallas_src>
import functools

import jax
import jax.numpy as jnp
from jax.experimental import pallas as pl
from jax.experimental.pallas import tpu as pltpu


def _round_up(x, m):
    return ((x + m - 1) // m) * m


def _unlearning_loss_kernel(outputs_ref, labels_ref, out_ref, acc_ref, *,
                            n_valid, target_class, penalty_weight):
    i = pl.program_id(0)

    @pl.when(i == 0)
    def _():
        acc_ref[0] = 0.0
        acc_ref[1] = 0.0

    logits = outputs_ref[...].astype(jnp.float32)   # [T, C] (upcast after load)
    labels = labels_ref[...]                        # [T, 1] int32
    t, c = logits.shape

    # Row-validity mask: excludes zero-padded rows of the (possibly ragged)
    # last tile from both the NLL sum and the penalty count.
    row = jax.lax.broadcasted_iota(jnp.int32, (t, 1), 0)        # [T, 1]
    valid = (i * t + row) < n_valid                             # [T, 1] bool

    # ---- fused cross-entropy: nll = logsumexp(logits) - logits[label] ----
    row_max = jnp.max(logits, axis=1, keepdims=True)            # [T, 1]
    lse = jnp.log(jnp.sum(jnp.exp(logits - row_max), axis=1, keepdims=True))
    col = jax.lax.broadcasted_iota(jnp.int32, (t, c), 1)        # [T, C]
    onehot = col == labels                                      # [T, C] bool
    label_logit = jnp.sum(jnp.where(onehot, logits, 0.0),
                          axis=1, keepdims=True)                # [T, 1]
    nll = (row_max + lse) - label_logit                         # [T, 1]
    nll_sum = jnp.sum(jnp.where(valid, nll, 0.0))

    # ---- first-max argmax (matches torch.argmax tie-breaking) ----
    is_max = logits == row_max
    cand = jnp.where(is_max, col, jnp.int32(c))
    predicted = jnp.min(cand, axis=1, keepdims=True)            # [T, 1]

    # ---- penalty: count of samples with predicted == label == target ----
    hit = (predicted == labels) & (labels == jnp.int32(target_class)) & valid
    hit_count = jnp.sum(hit.astype(jnp.float32))

    acc_ref[0] += nll_sum
    acc_ref[1] += hit_count

    @pl.when(i == pl.num_programs(0) - 1)
    def _():
        out_ref[0, 0] = (acc_ref[0] / jnp.float32(n_valid)
                         + acc_ref[1] * jnp.float32(penalty_weight))


def unlearning_loss(outputs, labels, key, *, target_class, penalty_weight=2.0,
                    max_tile_n=1024):
    """Pallas equivalent of UnlearningLoss.forward(outputs, labels).

    `outputs` is passed to the kernel in its native dtype (bf16 or f32);
    the f32 upcast happens inside the kernel after the VMEM load.
    """
    labels = labels.astype(jnp.int32)

    # Glue: relabel target-class samples with a random class in [0, 9),
    # mirroring torch.randint_like(labels, 0, 9).
    rand_labels = jax.random.randint(key, labels.shape, 0, 9, dtype=jnp.int32)
    labels = jnp.where(labels == target_class, rand_labels, labels)

    n, c = outputs.shape

    # Tile the batch axis; sublane dim must be a multiple of 8.
    tile_n = min(int(max_tile_n), _round_up(n, 8))
    n_pad = _round_up(n, tile_n)
    num_tiles = n_pad // tile_n

    if n_pad != n:
        outputs = jnp.pad(outputs, ((0, n_pad - n), (0, 0)))
        labels = jnp.pad(labels, (0, n_pad - n))
    labels2d = labels.reshape(n_pad, 1)

    kernel = functools.partial(
        _unlearning_loss_kernel,
        n_valid=n,
        target_class=int(target_class),
        penalty_weight=float(penalty_weight),
    )

    # Per-tile VMEM (lane-padded to 128, f32 working set), x2 inputs,
    # x2 double-buffering, plus headroom; clamp to stay safe on v7x (64 MiB).
    tile_vmem_bytes = tile_n * 128 * 4
    vmem_limit = int(min(48 * 2**20, max(4 * 2**20, 8 * tile_vmem_bytes)))

    out = pl.pallas_call(
        kernel,
        out_shape=jax.ShapeDtypeStruct((1, 1), jnp.float32),
        grid_spec=pltpu.PrefetchScalarGridSpec(
            num_scalar_prefetch=0,
            grid=(num_tiles,),
            in_specs=[
                pl.BlockSpec((tile_n, c), lambda i: (i, 0)),  # outputs tile
                pl.BlockSpec((tile_n, 1), lambda i: (i, 0)),  # labels tile
            ],
            out_specs=pl.BlockSpec(memory_space=pltpu.MemorySpace.SMEM),
            scratch_shapes=[pltpu.SMEM((2,), jnp.float32)],   # [nll_sum, count]
        ),
        compiler_params=pltpu.CompilerParams(
            dimension_semantics=("arbitrary",),
            vmem_limit_bytes=vmem_limit,
        ),
        cost_estimate=pl.CostEstimate(
            flops=10 * n_pad * c,
            transcendentals=n_pad * c,
            bytes_accessed=int(outputs.size * outputs.dtype.itemsize
                               + labels2d.size * 4 + 4),
        ),
    )(outputs, labels2d)
    return out[0, 0]


def _reference_loss(outputs, labels, key, *, target_class, penalty_weight=2.0):
    """Plain-JAX reference (same relabeling as the wrapper)."""
    labels = labels.astype(jnp.int32)
    rand_labels = jax.random.randint(key, labels.shape, 0, 9, dtype=jnp.int32)
    lab = jnp.where(labels == target_class, rand_labels, labels)
    logits = outputs.astype(jnp.float32)
    logp = jax.nn.log_softmax(logits, axis=1)
    n = outputs.shape[0]
    ce = -jnp.mean(logp[jnp.arange(n), lab])
    pred = jnp.argmax(logits, axis=1)
    pen = jnp.sum((pred == lab) & (lab == target_class)).astype(jnp.float32)
    return ce + pen * penalty_weight


if __name__ == "__main__":
    key = jax.random.PRNGKey(0)
    k_out, k_lab, k_rand, k_out2, k_lab2, k_rand2 = jax.random.split(key, 6)

    target_class = 3

    # --- small f32 case (single tile) ---
    N, C = 8, 10
    outputs = jax.random.normal(k_out, (N, C), dtype=jnp.float32)
    labels = jax.random.randint(k_lab, (N,), 0, C, dtype=jnp.int32)

    loss = unlearning_loss(outputs, labels, k_rand,
                           target_class=target_class, penalty_weight=2.0)
    jax.block_until_ready(loss)
    ref = _reference_loss(outputs, labels, k_rand,
                          target_class=target_class, penalty_weight=2.0)
    assert jnp.allclose(loss, ref, rtol=1e-5, atol=1e-5), (loss, ref)

    # --- bf16 inputs, ragged multi-tile grid (exercises padding + accumulation) ---
    N2, C2 = 200, 10
    outputs2 = jax.random.normal(k_out2, (N2, C2), dtype=jnp.float32)
    outputs2_bf16 = outputs2.astype(jnp.bfloat16)
    labels2 = jax.random.randint(k_lab2, (N2,), 0, C2, dtype=jnp.int32)

    loss2 = unlearning_loss(outputs2_bf16, labels2, k_rand2,
                            target_class=target_class, penalty_weight=2.0,
                            max_tile_n=128)  # -> grid of 2 tiles, ragged last
    jax.block_until_ready(loss2)
    ref2 = _reference_loss(outputs2_bf16, labels2, k_rand2,
                           target_class=target_class, penalty_weight=2.0)
    assert jnp.allclose(loss2, ref2, rtol=1e-4, atol=1e-4), (loss2, ref2)

    print("KERNEL_OK")
</pallas_src>

<mosaic_0001>
module attributes {stable_mosaic.version = 11 : i64} {
  func.func @_unlearning_loss_kernel(%arg0: i32, %arg1: memref<8x10xf32, #tpu.memory_space<vmem>>, %arg2: memref<8x1xi32, #tpu.memory_space<vmem>>, %arg3: memref<1x1xf32, #tpu.memory_space<smem>>, %arg4: memref<2xf32, #tpu.memory_space<smem>>) attributes {dimension_semantics = [#tpu.dimension_semantics<arbitrary>], iteration_bounds = array<i64: 1>, scalar_prefetch = 0 : i64, scratch_operands = 1 : i64, tpu.core_type = #tpu.core_type<tc>, window_params = [{transform_indices = @transform_0, window_bounds = array<i64: 8, 10>}, {transform_indices = @transform_1, window_bounds = array<i64: 8, 1>}, {transform_indices = @transform_2, window_bounds = array<i64: 1, 1>}]} {
    %c0_i32 = arith.constant 0 : i32
    %0 = arith.cmpi eq, %arg0, %c0_i32 : i32
    %1 = arith.extui %0 : i1 to i32
    %c0_i32_0 = arith.constant 0 : i32
    %2 = arith.cmpi ne, %1, %c0_i32_0 : i32
    scf.if %2 {
      %cst_17 = arith.constant 0.000000e+00 : f32
      %c0_18 = arith.constant 0 : index
      %60 = memref.load %arg4[%c0_18] : memref<2xf32, #tpu.memory_space<smem>>
      memref.store %cst_17, %arg4[%c0_18] : memref<2xf32, #tpu.memory_space<smem>>
      %cst_19 = arith.constant 0.000000e+00 : f32
      %c1_20 = arith.constant 1 : index
      %61 = memref.load %arg4[%c1_20] : memref<2xf32, #tpu.memory_space<smem>>
      memref.store %cst_19, %arg4[%c1_20] : memref<2xf32, #tpu.memory_space<smem>>
    } else {
    }
    %c0 = arith.constant 0 : index
    %c0_1 = arith.constant 0 : index
    %3 = vector.load %arg1[%c0, %c0_1] : memref<8x10xf32, #tpu.memory_space<vmem>>, vector<8x10xf32>
    %c0_2 = arith.constant 0 : index
    %c0_3 = arith.constant 0 : index
    %4 = vector.load %arg2[%c0_2, %c0_3] : memref<8x1xi32, #tpu.memory_space<vmem>>, vector<8x1xi32>
    %5 = tpu.iota {dimensions = array<i32: 0>} : vector<8x1xi32>
    %c8_i32 = arith.constant 8 : i32
    %6 = arith.muli %arg0, %c8_i32 : i32
    %7 = vector.broadcast %6 : i32 to vector<8x1xi32>
    %8 = arith.addi %7, %5 : vector<8x1xi32>
    %c8_i32_4 = arith.constant 8 : i32
    %9 = vector.broadcast %c8_i32_4 : i32 to vector<8x1xi32>
    %10 = arith.cmpi slt, %8, %9 : vector<8x1xi32>
    %cst = arith.constant dense<0xFF800000> : vector<8xf32>
    %11 = vector.multi_reduction <maximumf>, %3, %cst [1] : vector<8x10xf32> to vector<8xf32>
    %12 = vector.shape_cast %11 : vector<8xf32> to vector<8x1xf32>
    %13 = vector.broadcast %12 : vector<8x1xf32> to vector<8x10xf32>
    %14 = arith.subf %3, %13 : vector<8x10xf32>
    %15 = math.exp %14 : vector<8x10xf32>
    %cst_5 = arith.constant dense<0.000000e+00> : vector<8xf32>
    %16 = vector.multi_reduction <add>, %15, %cst_5 [1] : vector<8x10xf32> to vector<8xf32>
    %17 = vector.shape_cast %16 : vector<8xf32> to vector<8x1xf32>
    %18 = math.log %17 : vector<8x1xf32>
    %19 = tpu.iota {dimensions = array<i32: 1>} : vector<8x10xi32>
    %20 = vector.broadcast %4 : vector<8x1xi32> to vector<8x10xi32>
    %21 = arith.cmpi eq, %19, %20 : vector<8x10xi32>
    %cst_6 = arith.constant 0.000000e+00 : f32
    %22 = vector.broadcast %cst_6 : f32 to vector<8x10xf32>
    %23 = arith.select %21, %3, %22 : vector<8x10xi1>, vector<8x10xf32>
    %cst_7 = arith.constant dense<0.000000e+00> : vector<8xf32>
    %24 = vector.multi_reduction <add>, %23, %cst_7 [1] : vector<8x10xf32> to vector<8xf32>
    %25 = vector.shape_cast %24 : vector<8xf32> to vector<8x1xf32>
    %26 = arith.addf %12, %18 : vector<8x1xf32>
    %27 = arith.subf %26, %25 : vector<8x1xf32>
    %cst_8 = arith.constant 0.000000e+00 : f32
    %28 = vector.broadcast %cst_8 : f32 to vector<8x1xf32>
    %29 = arith.select %10, %27, %28 : vector<8x1xi1>, vector<8x1xf32>
    %30 = vector.shape_cast %29 : vector<8x1xf32> to vector<1x8x1xf32>
    %cst_9 = arith.constant dense<0.000000e+00> : vector<1xf32>
    %31 = vector.multi_reduction <add>, %30, %cst_9 [1, 2] : vector<1x8x1xf32> to vector<1xf32>
    %32 = vector.shape_cast %31 : vector<1xf32> to vector<1x1x1xf32>
    %33 = vector.extract %32[0, 0, 0] : f32 from vector<1x1x1xf32>
    %34 = vector.broadcast %12 : vector<8x1xf32> to vector<8x10xf32>
    %35 = arith.cmpf oeq, %3, %34 : vector<8x10xf32>
    %c10_i32 = arith.constant 10 : i32
    %36 = vector.broadcast %c10_i32 : i32 to vector<8x10xi32>
    %37 = arith.select %35, %19, %36 : vector<8x10xi1>, vector<8x10xi32>
    %cst_10 = arith.constant dense<2147483647> : vector<8xi32>
    %38 = vector.multi_reduction <minsi>, %37, %cst_10 [1] : vector<8x10xi32> to vector<8xi32>
    %39 = vector.shape_cast %38 : vector<8xi32> to vector<8x1xi32>
    %40 = arith.cmpi eq, %39, %4 : vector<8x1xi32>
    %c3_i32 = arith.constant 3 : i32
    %41 = vector.broadcast %c3_i32 : i32 to vector<8x1xi32>
    %42 = arith.cmpi eq, %4, %41 : vector<8x1xi32>
    %43 = arith.andi %40, %42 : vector<8x1xi1>
    %44 = arith.andi %43, %10 : vector<8x1xi1>
    %45 = arith.extui %44 : vector<8x1xi1> to vector<8x1xi32>
    %46 = arith.sitofp %45 : vector<8x1xi32> to vector<8x1xf32>
    %47 = vector.shape_cast %46 : vector<8x1xf32> to vector<1x8x1xf32>
    %cst_11 = arith.constant dense<0.000000e+00> : vector<1xf32>
    %48 = vector.multi_reduction <add>, %47, %cst_11 [1, 2] : vector<1x8x1xf32> to vector<1xf32>
    %49 = vector.shape_cast %48 : vector<1xf32> to vector<1x1x1xf32>
    %50 = vector.extract %49[0, 0, 0] : f32 from vector<1x1x1xf32>
    %c0_12 = arith.constant 0 : index
    %51 = memref.load %arg4[%c0_12] : memref<2xf32, #tpu.memory_space<smem>>
    %52 = arith.addf %51, %33 : f32
    %c0_13 = arith.constant 0 : index
    %53 = memref.load %arg4[%c0_13] : memref<2xf32, #tpu.memory_space<smem>>
    memref.store %52, %arg4[%c0_13] : memref<2xf32, #tpu.memory_space<smem>>
    %c1 = arith.constant 1 : index
    %54 = memref.load %arg4[%c1] : memref<2xf32, #tpu.memory_space<smem>>
    %55 = arith.addf %54, %50 : f32
    %c1_14 = arith.constant 1 : index
    %56 = memref.load %arg4[%c1_14] : memref<2xf32, #tpu.memory_space<smem>>
    memref.store %55, %arg4[%c1_14] : memref<2xf32, #tpu.memory_space<smem>>
    %c0_i32_15 = arith.constant 0 : i32
    %57 = arith.cmpi eq, %arg0, %c0_i32_15 : i32
    %58 = arith.extui %57 : i1 to i32
    %c0_i32_16 = arith.constant 0 : i32
    %59 = arith.cmpi ne, %58, %c0_i32_16 : i32
    scf.if %59 {
      %c0_17 = arith.constant 0 : index
      %60 = memref.load %arg4[%c0_17] : memref<2xf32, #tpu.memory_space<smem>>
      %cst_18 = arith.constant 8.000000e+00 : f32
      %61 = arith.divf %60, %cst_18 : f32
      %c1_19 = arith.constant 1 : index
      %62 = memref.load %arg4[%c1_19] : memref<2xf32, #tpu.memory_space<smem>>
      %cst_20 = arith.constant 2.000000e+00 : f32
      %63 = arith.mulf %62, %cst_20 : f32
      %64 = arith.addf %61, %63 : f32
      %c0_21 = arith.constant 0 : index
      %c0_22 = arith.constant 0 : index
      %65 = memref.load %arg3[%c0_21, %c0_22] : memref<1x1xf32, #tpu.memory_space<smem>>
      memref.store %64, %arg3[%c0_21, %c0_22] : memref<1x1xf32, #tpu.memory_space<smem>>
    } else {
    }
    return
  }
  func.func @transform_0(%arg0: i32) -> (i32, i32) {
    %c0_i32 = arith.constant 0 : i32
    %c0_i32_0 = arith.constant 0 : i32
    return %arg0, %c0_i32 : i32, i32
  }
  func.func @transform_1(%arg0: i32) -> (i32, i32) {
    %c0_i32 = arith.constant 0 : i32
    %c0_i32_0 = arith.constant 0 : i32
    return %arg0, %c0_i32 : i32, i32
  }
  func.func @transform_2(%arg0: i32) -> (i32, i32) {
    %c0_i32 = arith.constant 0 : i32
    %c0_i32_0 = arith.constant 0 : i32
    %c0_i32_1 = arith.constant 0 : i32
    return %c0_i32, %c0_i32_0 : i32, i32
  }
}

</mosaic_0001>

<llo_original>
// kernel: tpu_custom_call.1
$region0: #{tpu_custom_call.1}
  #allocation0 [shape = 'u32[]', space=smem, size = 0x4, offset = 0x4, fixed_abs, tag = 'smem constant byte address 0x4 - core index']
  #allocation1 [shape = 'u32[144,128]{1,0:T(1,128)}', space=vmem, size = 0x12000, scoped, tag = 'internal scratch']
  #allocation2 [shape = 'f32[2]{0:T(128)}', space=smem, size = 0x200, scoped, tag = 'scratch operand']
  %s0 = inlined_call_operand.vmem [shape: f32[8,10], index: 0, kind: input, shape index: {}]
  %s1 = inlined_call_operand.vmem [shape: s32[8,1], index: 1, kind: input, shape index: {}]
  %s2 = inlined_call_operand.hbm [shape: f32[1,1], index: 2, kind: output, shape index: {}]
  %s3 = sld [smem:[#allocation0]]
  $region26: #{tpu_custom_call.1} parent=0
    _
  %s5 = ssub.s32 1, %s3
  %s6 = scalar_select 0, %s5, %s3
  $region1: #{tpu_custom_call.1} parent=0
    #allocation3 [shape = 'u8[512]{0}', space=smem, size = 0x200, scoped, tag = 'output window, operand 0, single buffered']
    #allocation4 [shape = 's32[1]{0}', space=sflag, size = 0x4, scoped, tag = 'scoped memory for tpu_custom_call.1']
    %7 = vsyncpa [#allocation4], 0
    // Predicated region
    $region2: #{tpu_custom_call.1} parent=1 // pred_check
      _
    $region3: #{tpu_custom_call.1} parent=1 // pred_check_branch
      %9 = sbr.rel (0) target = $region5
    $region4: #{tpu_custom_call.1} parent=1 // pred_region
      _
    $region5: #{tpu_custom_call.1} parent=1 // pred_fallthru
      _
    // Predicated region
    $region6: #{tpu_custom_call.1} parent=1 // pred_check
      _
    $region7: #{tpu_custom_call.1} parent=1 // pred_check_branch
      %11 = sbr.rel (0) target = $region9
    $region8: #{tpu_custom_call.1} parent=1 // pred_region
      _
    $region9: #{tpu_custom_call.1} parent=1 // pred_fallthru
      _
    %p12 = scmp.eq.s32.totalorder 0, 0
    // Predicated region
    $region10: #{tpu_custom_call.1} parent=1 // pred_check
      %p13 = pneg %p12
    $region11: #{tpu_custom_call.1} parent=1 // pred_check_branch
      %15 = sbr.rel (%p13) target = $region13
    $region12: #{tpu_custom_call.1} parent=1 // pred_region
      %s16 = scalar_lea.smem [#allocation2], 0
      %17 = sst [smem:[%s16]] 0.0
      %s18 = scalar_lea.smem [#allocation2], 1
      %19 = sst [smem:[%s18]] 0.0
    $region13: #{tpu_custom_call.1} parent=1 // pred_fallthru
      _
    %v20 = vld [vmem:[%s0] sm:$0xff]
    %v21 = vld [vmem:[%s1] sm:$0xff]
    %v22 = vlaneseq
    %v23 = vshrl.u32 %v22, 7
    %s24 = smul.u32 0, 8
    %v25 = vstv %s24
    %v26 = vadd.s32 %v25, %v23
    %vm27 = vcmp.lt.s32.totalorder %v26, 8
    %vm28 = vcmask 80896
    %v29 = vsel %vm28, %v20, -inf
    %30 = vmax.xlane.f32.xlu0 %v29
    %v31 = vpop.xlane.xlu0 %30
    %v32 = vsub.f32 %v20, %v31
    %v33 = vmul.f32 %v32, 1.442695
    %v34 = vpow.pop %v33
    %v35 = vsel %vm28, %v34, 0.0
    %36 = vadd.xlane.f32.xlu0 %v35
    %v37 = vpop.xlane.xlu0 %36
    %v38 = vlog2.pop %v37
    %v39 = vmul.f32 %v38, 0.6931472
    %v40 = vlaneseq
    %v41 = vand.u32 %v40, 127
    %42 = vset.pattern.permute.xlu0 0
    %43 = vperm.xlu0 %42, %v21
    %v44 = vpop.permute.xlu0 %43
    %vm45 = vcmp.eq.s32.totalorder %v41, %v44
    %v46 = vsel %vm45, %v20, 0.0
    %v47 = vsel %vm28, %v46, 0.0
    %48 = vadd.xlane.f32.xlu0 %v47
    %v49 = vpop.xlane.xlu0 %48
    %v50 = vadd.f32 %v31, %v39
    %v51 = vsub.f32 %v50, %v49
    %v52 = vsel %vm27, %v51, 0.0
    %vm53 = vcmask 7168
    %v54 = vsel %vm53, %v52, 0.0
    %55 = vadd.xlane.f32.xlu0 %v54
    %v56 = vpop.xlane.xlu0 %55
    %v57 = vrot.slane %v56, 4
    %v58 = vadd.f32 %v56, %v57
    %v59 = vrot.slane %v58, 2
    %v60 = vadd.f32 %v58, %v59
    %v61 = vrot.slane %v60, 1
    %v62 = vadd.f32 %v60, %v61
    %s63 = vtos %v62
    %vm64 = vcmp.eq.f32.partialorder %v20, %v31
    %v65 = vsel %vm64, %v41, 10
    %v66 = vsel %vm28, %v65, 2147483647
    %v67 = vand.u32 %v66, 65535
    %v68 = vshra.s32 %v66, 16
    %v69 = vcvt.s32.f32 %v67
    %v70 = vcvt.s32.f32 %v68
    %71 = vmin.xlane.f32.xlu0 %v70
    %v72 = vpop.xlane.xlu0 %71
    %vm73 = vcmp.eq.f32.partialorder %v70, %v72
    %v74 = vsel %vm73, %v69, inf
    %75 = vmin.xlane.f32.xlu0 %v74
    %v76 = vpop.xlane.xlu0 %75
    %v77 = vcvt.f32.s32 %v76
    %v78 = vcvt.f32.s32 %v72
    %v79 = vshll.u32 %v78, 16
    %v80 = vadd.s32 %v79, %v77
    %vm81 = vcmp.eq.s32.totalorder %v80, %v21
    %vm82 = vcmp.eq.s32.totalorder %v21, 3
    %vm83 = vmand %vm81, %vm82
    %vm84 = vmand %vm83, %vm27
    %v85 = vsel %vm84, 1, 0
    %v86 = vcvt.s32.f32 %v85
    %v87 = vsel %vm53, %v86, 0.0
    %88 = vadd.xlane.f32.xlu0 %v87
    %v89 = vpop.xlane.xlu0 %88
    %v90 = vrot.slane %v89, 4
    %v91 = vadd.f32 %v89, %v90
    %v92 = vrot.slane %v91, 2
    %v93 = vadd.f32 %v91, %v92
    %v94 = vrot.slane %v93, 1
    %v95 = vadd.f32 %v93, %v94
    %s96 = vtos %v95
    %s97 = sld [smem:[#allocation2]]
    %s98 = sadd.f32 %s97, %s63
    %s99 = scalar_lea.smem [#allocation2], 0
    %100 = sst [smem:[%s99]] %s98
    %s101 = sld [smem:[#allocation2 + $0x1]]
    %s102 = sadd.f32 %s101, %s96
    %s103 = scalar_lea.smem [#allocation2], 1
    %104 = sst [smem:[%s103]] %s102
    // Predicated region
    $region14: #{tpu_custom_call.1} parent=1 // pred_check
      %p105 = pneg %p12
    $region15: #{tpu_custom_call.1} parent=1 // pred_check_branch
      %107 = sbr.rel (%p105) target = $region17
    $region16: #{tpu_custom_call.1} parent=1 // pred_region
      %s108 = sld [smem:[#allocation2]]
      %v109 = vrcp.pop 8.0
      %s110 = vtos %v109
      %s111 = smul.f32 %s108, %s110
      %s112 = sld [smem:[#allocation2 + $0x1]]
      %s113 = smul.f32 %s112, 2.0
      %s114 = sadd.f32 %s111, %s113
      %s115 = scalar_lea.smem [#allocation3], 0
      %116 = sst [smem:[%s115]] %s114
    $region17: #{tpu_custom_call.1} parent=1 // pred_fallthru
      _
    // Predicated region
    $region18: #{tpu_custom_call.1} parent=1 // pred_check
      _
    $region19: #{tpu_custom_call.1} parent=1 // pred_check_branch
      %118 = sbr.rel (0) target = $region21
    $region20: #{tpu_custom_call.1} parent=1 // pred_region
      %s120 = ssub.s32 16, 16
      %121 = vsyncadd [#allocation4], %s120
      %124 = dma.smem_to_hbm [#allocation3], 16, %s2, [#allocation4]
    $region21: #{tpu_custom_call.1} parent=1 // pred_fallthru
      _
    // Predicated region
    $region22: #{tpu_custom_call.1} parent=1 // pred_check
      _
    $region23: #{tpu_custom_call.1} parent=1 // pred_check_branch
      %126 = sbr.rel (0) target = $region25
    $region24: #{tpu_custom_call.1} parent=1 // pred_region
      %127 = dma.done [#allocation4], 16
    $region25: #{tpu_custom_call.1} parent=1 // pred_fallthru
      _
    %128 = sfence
    %129 = vsyncpa [#allocation4], 1

</llo_original>
